<compile_context>
chip_gen: v6e
topology: v6e:2x2x1
jax: 0.10.0
libtpu: 0.0.40
codegen_flags: <defaults>
</compile_context>

<pallas_src>
import jax
import jax.numpy as jnp
from jax.experimental import pallas as pl
from jax.experimental.pallas import tpu as pltpu

# ---- module hyperparameters (from the PyTorch source) ----
encode_layer = 12
filter_sizes = [2, 2, 2]
hidden_size = 768
n_class = 2
num_filters = 3
num_filter_total = num_filters * len(filter_sizes)   # 9

_N_PAD = 128          # lane-dense padded logit width (multiple of 128)
_NEG_BIG = -1e30      # bias for padded logit lanes -> exp() underflows to exactly 0 (f32)
_VMEM_LIMIT = 32 * 1024 * 1024


def textcnn_kernel(x_ref, w_ref, bc_ref, wlin_ref, blin_ref, out_ref):
    """Fused conv(kernel=(2,H)) + ReLU + max-pool + Linear + softmax.

    x_ref    : (TB, L, H)     input tile (incoming dtype: bf16 or f32)
    w_ref    : (H, 2*F)       fused conv weights [row0 | row1] for all 9 filters
    bc_ref   : (1, F)         conv biases (f32)
    wlin_ref : (F, 128)       pre-transposed Linear weight, zero-padded lanes (f32)
    blin_ref : (1, 128)       bias parameter, -1e30 in padded lanes (f32)
    out_ref  : (TB, 128)      softmax probabilities (padded lanes are exactly 0)
    """
    L = x_ref.shape[1]
    F = bc_ref.shape[1]

    # In-kernel dtype cast (review item 1c): avoids a standalone wrapper-side XLA
    # convert and its extra HBM round trip.  The VPU cast hides under the DMA on
    # this mem-bound kernel; MXU accumulation is f32 regardless.
    x = x_ref[...].astype(w_ref.dtype)

    # One fused contraction over the hidden dim (single MXU matmul over (TB*L, H)).
    y = jnp.einsum("blh,hf->blf", x, w_ref[...],
                   preferred_element_type=jnp.float32)        # (TB, L, 2F)

    # conv output at position p = (kernel row 0 term at p) + (kernel row 1 term at p+1)
    s = y[:, :L - 1, :F] + y[:, 1:, F:]                        # (TB, L-1, F)

    # Max-pool over positions first; bias + ReLU hoisted after the pool (monotone).
    pooled = jnp.max(s, axis=1)                                # (TB, F)
    pooled = jnp.maximum(pooled + bc_ref[...], 0.0)

    # Linear (pre-transposed, lane-padded) + learned bias; softmax over the padded row.
    logits = (jnp.dot(pooled, wlin_ref[...],
                      preferred_element_type=jnp.float32) + blin_ref[...])  # (TB, 128)
    m = jnp.max(logits, axis=-1, keepdims=True)
    e = jnp.exp(logits - m)                                    # padded lanes -> exactly 0
    denom = jnp.sum(e, axis=-1, keepdims=True)
    out_ref[...] = e * pl.reciprocal(denom, approx=True)


def _choose_tile_b(batch, cap):
    """Batch tile: 8-aligned, <= cap, and guaranteeing >= 2 grid steps whenever
    batch > 8 so v7x's two TensorCores both get work under ("parallel",) semantics.
    The grid uses pl.cdiv, so the tile need NOT divide batch (Pallas handles the
    ragged last block; padded softmax rows are row-independent and sliced off)."""
    if batch <= 8:
        return batch                          # single tiny tile == full array dims
    half = (batch + 1) // 2
    return min(cap, max(8, (half // 8) * 8))


def textcnn_forward(x, conv_w, conv_b, lin_w, bias, compute_dtype=jnp.bfloat16):
    """x: (B, L, H) in bf16 (preferred) or f32 — passed to the kernel untouched;
    conv_w: (3, num_filters, 2, H); conv_b: (3, num_filters);
    lin_w: (n_class, 9); bias: (n_class,)."""
    assert all(s == 2 for s in filter_sizes), "kernel hard-codes filter height 2"
    B, L, H = x.shape
    assert L == encode_layer and H == hidden_size
    F = num_filter_total

    # Fuse the three convs: columns ordered conv0[f0..f2], conv1[f0..f2], conv2[...]
    # to match torch.cat(pooled_outputs, dim=3) + reshape.
    # conv_w[c, f, r, h] -> W_r[h, c*num_filters + f]; concat the two kernel rows.
    w0 = jnp.transpose(conv_w[:, :, 0, :], (2, 0, 1)).reshape(H, F)
    w1 = jnp.transpose(conv_w[:, :, 1, :], (2, 0, 1)).reshape(H, F)
    w_cat = jnp.concatenate([w0, w1], axis=1).astype(compute_dtype)       # (H, 18)

    bc = conv_b.reshape(1, F).astype(jnp.float32)

    # Pre-transposed, lane-padded Linear weight/bias -> lane-dense (TB, 128) output.
    wlin_pad = jnp.zeros((F, _N_PAD), jnp.float32).at[:, :n_class].set(
        lin_w.T.astype(jnp.float32))
    blin_pad = jnp.full((1, _N_PAD), _NEG_BIG, jnp.float32).at[0, :n_class].set(
        bias.astype(jnp.float32))

    # NOTE: x is NOT cast here (review item 1): the kernel reads x in its incoming
    # dtype and casts on-chip.  Produce bf16 x upstream for the minimal-traffic path.
    in_itemsize = jnp.dtype(x.dtype).itemsize

    # Batch tile caps (corrected VMEM accounting incl. 12->16 sublane padding):
    #   bf16 x, TB=256 -> ~12.6 MiB double-buffered x + ~4 MiB intermediates ~= 17 MiB
    #   f32  x, TB=128 -> ~12.6 MiB double-buffered x + ~5 MiB intermediates ~= 18 MiB
    # Both fit the explicit 32 MiB scoped-VMEM limit on v5e/v6e/v7x.
    cap = 256 if in_itemsize <= 2 else 128
    tile_b = _choose_tile_b(B, cap)
    grid = (pl.cdiv(B, tile_b),)

    cost = pl.CostEstimate(
        flops=2 * B * L * H * (2 * F) + 2 * B * F * _N_PAD,
        transcendentals=B * _N_PAD,
        bytes_accessed=(B * L * H * in_itemsize
                        + H * 2 * F * jnp.dtype(compute_dtype).itemsize
                        + B * _N_PAD * 4),
    )

    out = pl.pallas_call(
        textcnn_kernel,
        out_shape=jax.ShapeDtypeStruct((B, _N_PAD), jnp.float32),
        grid=grid,
        in_specs=[
            pl.BlockSpec((tile_b, L, H), lambda i: (i, 0, 0)),
            pl.BlockSpec((H, 2 * F), lambda i: (0, 0)),
            pl.BlockSpec((1, F), lambda i: (0, 0)),
            pl.BlockSpec((F, _N_PAD), lambda i: (0, 0)),
            pl.BlockSpec((1, _N_PAD), lambda i: (0, 0)),
        ],
        out_specs=pl.BlockSpec((tile_b, _N_PAD), lambda i: (i, 0)),
        compiler_params=pltpu.CompilerParams(
            dimension_semantics=("parallel",),
            vmem_limit_bytes=_VMEM_LIMIT),
        cost_estimate=cost,
    )(x, w_cat, bc, wlin_pad, blin_pad)

    return out[:, :n_class]


def textcnn_reference(x, conv_w, conv_b, lin_w, bias):
    """Pure-JAX reference mirroring the PyTorch forward exactly."""
    pooled_list = []
    for c, size in enumerate(filter_sizes):
        L_out = encode_layer - size + 1
        outs = []
        for p in range(L_out):
            win = x[:, p:p + size, :]                       # (B, size, H)
            o = jnp.einsum("bsh,fsh->bf", win, conv_w[c]) + conv_b[c]
            outs.append(o)
        h = jnp.maximum(jnp.stack(outs, axis=2), 0.0)       # (B, F, L_out)
        pooled = jnp.max(h, axis=2)                          # (B, F)
        pooled_list.append(pooled)
    h_pool_flat = jnp.concatenate(pooled_list, axis=1)       # (B, 9)
    logits = h_pool_flat @ lin_w.T + bias
    return jax.nn.softmax(logits, axis=-1)


if __name__ == "__main__":
    key = jax.random.PRNGKey(0)
    kx1, kx2, kw, kb, kl = jax.random.split(key, 5)

    # deterministic synthetic parameters (shapes from TextCNN.__init__)
    conv_w = 0.05 * jax.random.normal(
        kw, (len(filter_sizes), num_filters, filter_sizes[0], hidden_size),
        dtype=jnp.float32)
    conv_b = 0.1 * jax.random.normal(kb, (len(filter_sizes), num_filters),
                                     dtype=jnp.float32)
    lin_w = 0.1 * jax.random.normal(kl, (n_class, num_filter_total), dtype=jnp.float32)
    bias = jnp.ones((n_class,), dtype=jnp.float32)   # nn.Parameter(torch.ones([n_class]))

    # ---- test 1: small batch, f32 input + f32 compute (exact path, grid=(1,)) ----
    B1 = 2
    x1 = jax.random.normal(kx1, (B1, encode_layer, hidden_size), dtype=jnp.float32)
    ref1 = textcnn_reference(x1, conv_w, conv_b, lin_w, bias)
    out1 = jax.block_until_ready(
        textcnn_forward(x1, conv_w, conv_b, lin_w, bias, compute_dtype=jnp.float32))
    assert out1.shape == (B1, n_class)
    assert jnp.allclose(out1, ref1, atol=5e-3, rtol=5e-3), (out1, ref1)

    # ---- test 2: bf16 input (no wrapper cast), bf16 compute, ragged multi-step grid ----
    B2 = 20   # tile_b = 8 -> grid = (3,), last block ragged (rows 20..23 discarded)
    x2 = jax.random.normal(kx2, (B2, encode_layer, hidden_size),
                           dtype=jnp.float32).astype(jnp.bfloat16)
    ref2 = textcnn_reference(x2.astype(jnp.float32), conv_w, conv_b, lin_w, bias)
    out2 = jax.block_until_ready(textcnn_forward(x2, conv_w, conv_b, lin_w, bias))
    assert out2.shape == (B2, n_class)
    assert jnp.allclose(out2, ref2, atol=3e-2, rtol=3e-2), (out2, ref2)

    print("KERNEL_OK")
</pallas_src>

<mosaic_0001>
module attributes {stable_mosaic.version = 11 : i64} {
  func.func @textcnn_kernel(%arg0: i32, %arg1: memref<2x12x768xf32, #tpu.memory_space<vmem>>, %arg2: memref<768x18xf32, #tpu.memory_space<vmem>>, %arg3: memref<1x9xf32, #tpu.memory_space<vmem>>, %arg4: memref<9x128xf32, #tpu.memory_space<vmem>>, %arg5: memref<1x128xf32, #tpu.memory_space<vmem>>, %arg6: memref<2x128xf32, #tpu.memory_space<vmem>>) attributes {dimension_semantics = [#tpu.dimension_semantics<parallel>], iteration_bounds = array<i64: 1>, scalar_prefetch = 0 : i64, scratch_operands = 0 : i64, tpu.core_type = #tpu.core_type<tc>, window_params = [{transform_indices = @transform_0, window_bounds = array<i64: 2, 12, 768>}, {pipeline_mode = #tpu.pipeline_mode<synchronous>, transform_indices = @transform_1, window_bounds = array<i64: 768, 18>}, {pipeline_mode = #tpu.pipeline_mode<synchronous>, transform_indices = @transform_2, window_bounds = array<i64: 1, 9>}, {pipeline_mode = #tpu.pipeline_mode<synchronous>, transform_indices = @transform_3, window_bounds = array<i64: 9, 128>}, {pipeline_mode = #tpu.pipeline_mode<synchronous>, transform_indices = @transform_4, window_bounds = array<i64: 1, 128>}, {transform_indices = @transform_5, window_bounds = array<i64: 2, 128>}]} {
    %c0 = arith.constant 0 : index
    %c0_0 = arith.constant 0 : index
    %c0_1 = arith.constant 0 : index
    %0 = vector.load %arg1[%c0, %c0_0, %c0_1] : memref<2x12x768xf32, #tpu.memory_space<vmem>>, vector<2x12x768xf32>
    %c0_2 = arith.constant 0 : index
    %c0_3 = arith.constant 0 : index
    %1 = vector.load %arg2[%c0_2, %c0_3] : memref<768x18xf32, #tpu.memory_space<vmem>>, vector<768x18xf32>
    "tpu.trace_start"() <{level = 10 : i32, message = "blh,hf->blf"}> : () -> ()
    %cst = arith.constant dense<0.000000e+00> : vector<2x12x18xf32>
    %2 = tpu.matmul %0, %1, %cst {dimension_numbers = #tpu.dot_dimension_numbers<[2], [0], [0, 1], [1], [0, 0, 0, 1, 1, 1], [], []>} : vector<2x12x768xf32>, vector<768x18xf32>, vector<2x12x18xf32> -> vector<2x12x18xf32>
    "tpu.trace_stop"() : () -> ()
    %3 = vector.extract_strided_slice %2 {offsets = [0, 0, 0], sizes = [2, 11, 9], strides = [1, 1, 1]} : vector<2x12x18xf32> to vector<2x11x9xf32>
    %4 = vector.extract_strided_slice %2 {offsets = [0, 1, 9], sizes = [2, 11, 9], strides = [1, 1, 1]} : vector<2x12x18xf32> to vector<2x11x9xf32>
    %5 = arith.addf %3, %4 : vector<2x11x9xf32>
    %cst_4 = arith.constant dense<0xFF800000> : vector<2x9xf32>
    %6 = vector.multi_reduction <maximumf>, %5, %cst_4 [1] : vector<2x11x9xf32> to vector<2x9xf32>
    %c0_5 = arith.constant 0 : index
    %c0_6 = arith.constant 0 : index
    %7 = vector.load %arg3[%c0_5, %c0_6] : memref<1x9xf32, #tpu.memory_space<vmem>>, vector<1x9xf32>
    %8 = vector.broadcast %7 : vector<1x9xf32> to vector<2x9xf32>
    %9 = arith.addf %6, %8 : vector<2x9xf32>
    %cst_7 = arith.constant 0.000000e+00 : f32
    %10 = vector.broadcast %cst_7 : f32 to vector<2x9xf32>
    %11 = arith.maximumf %9, %10 : vector<2x9xf32>
    %c0_8 = arith.constant 0 : index
    %c0_9 = arith.constant 0 : index
    %12 = vector.load %arg4[%c0_8, %c0_9] : memref<9x128xf32, #tpu.memory_space<vmem>>, vector<9x128xf32>
    %cst_10 = arith.constant dense<0.000000e+00> : vector<2x128xf32>
    %13 = tpu.matmul %11, %12, %cst_10 {dimension_numbers = #tpu.dot_dimension_numbers<[1], [0], [0], [1], [0, 0, 1, 1], [], []>} : vector<2x9xf32>, vector<9x128xf32>, vector<2x128xf32> -> vector<2x128xf32>
    %c0_11 = arith.constant 0 : index
    %c0_12 = arith.constant 0 : index
    %14 = vector.load %arg5[%c0_11, %c0_12] : memref<1x128xf32, #tpu.memory_space<vmem>>, vector<1x128xf32>
    %15 = vector.broadcast %14 : vector<1x128xf32> to vector<2x128xf32>
    %16 = arith.addf %13, %15 : vector<2x128xf32>
    %cst_13 = arith.constant dense<0xFF800000> : vector<2xf32>
    %17 = vector.multi_reduction <maximumf>, %16, %cst_13 [1] : vector<2x128xf32> to vector<2xf32>
    %18 = vector.shape_cast %17 : vector<2xf32> to vector<2x1xf32>
    %19 = vector.broadcast %18 : vector<2x1xf32> to vector<2x128xf32>
    %20 = arith.subf %16, %19 : vector<2x128xf32>
    %21 = math.exp %20 : vector<2x128xf32>
    %cst_14 = arith.constant dense<0.000000e+00> : vector<2xf32>
    %22 = vector.multi_reduction <add>, %21, %cst_14 [1] : vector<2x128xf32> to vector<2xf32>
    %23 = vector.shape_cast %22 : vector<2xf32> to vector<2x1xf32>
    %24 = tpu.reciprocal %23 {approx = true} : vector<2x1xf32> -> vector<2x1xf32>
    %25 = vector.broadcast %24 : vector<2x1xf32> to vector<2x128xf32>
    %26 = arith.mulf %21, %25 : vector<2x128xf32>
    %c0_15 = arith.constant 0 : index
    %c0_16 = arith.constant 0 : index
    %27 = vector.load %arg6[%c0_15, %c0_16] : memref<2x128xf32, #tpu.memory_space<vmem>>, vector<2x128xf32>
    tpu.vector_store %arg6[%c0_15, %c0_16], %26 {strides = array<i32>} : memref<2x128xf32, #tpu.memory_space<vmem>>, vector<2x128xf32>,
    return
  }
  func.func @transform_0(%arg0: i32) -> (i32, i32, i32) {
    %c0_i32 = arith.constant 0 : i32
    %c0_i32_0 = arith.constant 0 : i32
    %c0_i32_1 = arith.constant 0 : i32
    return %arg0, %c0_i32, %c0_i32_0 : i32, i32, i32
  }
  func.func @transform_1(%arg0: i32) -> (i32, i32) {
    %c0_i32 = arith.constant 0 : i32
    %c0_i32_0 = arith.constant 0 : i32
    %c0_i32_1 = arith.constant 0 : i32
    return %c0_i32, %c0_i32_0 : i32, i32
  }
  func.func @transform_2(%arg0: i32) -> (i32, i32) {
    %c0_i32 = arith.constant 0 : i32
    %c0_i32_0 = arith.constant 0 : i32
    %c0_i32_1 = arith.constant 0 : i32
    return %c0_i32, %c0_i32_0 : i32, i32
  }
  func.func @transform_3(%arg0: i32) -> (i32, i32) {
    %c0_i32 = arith.constant 0 : i32
    %c0_i32_0 = arith.constant 0 : i32
    %c0_i32_1 = arith.constant 0 : i32
    return %c0_i32, %c0_i32_0 : i32, i32
  }
  func.func @transform_4(%arg0: i32) -> (i32, i32) {
    %c0_i32 = arith.constant 0 : i32
    %c0_i32_0 = arith.constant 0 : i32
    %c0_i32_1 = arith.constant 0 : i32
    return %c0_i32, %c0_i32_0 : i32, i32
  }
  func.func @transform_5(%arg0: i32) -> (i32, i32) {
    %c0_i32 = arith.constant 0 : i32
    %c0_i32_0 = arith.constant 0 : i32
    return %arg0, %c0_i32 : i32, i32
  }
}

</mosaic_0001>

<llo_original>
// kernel: tpu_custom_call.1
$region0: #{tpu_custom_call.1}
  #allocation0 [shape = 'u32[]', space=smem, size = 0x4, offset = 0x4, fixed_abs, tag = 'smem constant byte address 0x4 - core index']
  #allocation1 [shape = 'u32[144,128]{1,0:T(1,128)}', space=vmem, size = 0x12000, scoped, tag = 'internal scratch']
  %s0 = inlined_call_operand.vmem [shape: f32[2,12,768], index: 0, kind: input, shape index: {}]
  %s1 = inlined_call_operand.vmem [shape: f32[768,18], index: 1, kind: input, shape index: {}]
  %s2 = inlined_call_operand.vmem [shape: f32[1,9], index: 2, kind: input, shape index: {}]
  %s3 = inlined_call_operand.vmem [shape: f32[9,128], index: 3, kind: input, shape index: {}]
  %s4 = inlined_call_operand.vmem [shape: f32[1,128], index: 4, kind: input, shape index: {}]
  %s5 = inlined_call_operand.hbm [shape: f32[2,128], index: 5, kind: output, shape index: {}]
  %s6 = sld [smem:[#allocation0]]
  $region30: #{tpu_custom_call.1} parent=0
    _
  %s8 = ssub.s32 1, %s6
  %s9 = scalar_select 0, %s8, %s6
  $region1: #{tpu_custom_call.1} parent=0
    #allocation2 [shape = 'u8[1024]{0}', space=vmem, size = 0x400, scoped, tag = 'output window, operand 0, single buffered']
    #allocation3 [shape = 's32[1]{0}', space=sflag, size = 0x4, scoped, tag = 'scoped memory for tpu_custom_call.1']
    %10 = vsyncpa [#allocation3], 0
    // Predicated region
    $region2: #{tpu_custom_call.1} parent=1 // pred_check
      _
    $region3: #{tpu_custom_call.1} parent=1 // pred_check_branch
      %12 = sbr.rel (0) target = $region5
    $region4: #{tpu_custom_call.1} parent=1 // pred_region
      _
    $region5: #{tpu_custom_call.1} parent=1 // pred_fallthru
      _
    // Predicated region
    $region6: #{tpu_custom_call.1} parent=1 // pred_check
      _
    $region7: #{tpu_custom_call.1} parent=1 // pred_check_branch
      %14 = sbr.rel (0) target = $region9
    $region8: #{tpu_custom_call.1} parent=1 // pred_region
      _
    $region9: #{tpu_custom_call.1} parent=1 // pred_fallthru
      _
    // Predicated region
    $region10: #{tpu_custom_call.1} parent=1 // pred_check
      _
    $region11: #{tpu_custom_call.1} parent=1 // pred_check_branch
      %16 = sbr.rel (0) target = $region13
    $region12: #{tpu_custom_call.1} parent=1 // pred_region
      _
    $region13: #{tpu_custom_call.1} parent=1 // pred_fallthru
      _
    // Predicated region
    $region14: #{tpu_custom_call.1} parent=1 // pred_check
      _
    $region15: #{tpu_custom_call.1} parent=1 // pred_check_branch
      %18 = sbr.rel (0) target = $region17
    $region16: #{tpu_custom_call.1} parent=1 // pred_region
      _
    $region17: #{tpu_custom_call.1} parent=1 // pred_fallthru
      _
    // Predicated region
    $region18: #{tpu_custom_call.1} parent=1 // pred_check
      _
    $region19: #{tpu_custom_call.1} parent=1 // pred_check_branch
      %20 = sbr.rel (0) target = $region21
    $region20: #{tpu_custom_call.1} parent=1 // pred_region
      _
    $region21: #{tpu_custom_call.1} parent=1 // pred_fallthru
      _
    %v21 = vld [vmem:[%s0] sm:$0xff]
    %v22 = vld [vmem:[%s0 + $0x8] sm:$0xff]
    %v23 = vld [vmem:[%s0 + $0x10] sm:$0xff]
    %v24 = vld [vmem:[%s0 + $0x18] sm:$0xff]
    %v25 = vld [vmem:[%s0 + $0x20] sm:$0xff]
    %v26 = vld [vmem:[%s0 + $0x28] sm:$0xff]
    %v27 = vld [vmem:[%s0 + $0x30] sm:$0xf]
    %v28 = vld [vmem:[%s0 + $0x38] sm:$0xf]
    %v29 = vld [vmem:[%s0 + $0x40] sm:$0xf]
    %v30 = vld [vmem:[%s0 + $0x48] sm:$0xf]
    %v31 = vld [vmem:[%s0 + $0x50] sm:$0xf]
    %v32 = vld [vmem:[%s0 + $0x58] sm:$0xf]
    %v33 = vld [vmem:[%s0 + $0x60] sm:$0xff]
    %v34 = vld [vmem:[%s0 + $0x68] sm:$0xff]
    %v35 = vld [vmem:[%s0 + $0x70] sm:$0xff]
    %v36 = vld [vmem:[%s0 + $0x78] sm:$0xff]
    %v37 = vld [vmem:[%s0 + $0x80] sm:$0xff]
    %v38 = vld [vmem:[%s0 + $0x88] sm:$0xff]
    %v39 = vld [vmem:[%s0 + $0x90] sm:$0xf]
    %v40 = vld [vmem:[%s0 + $0x98] sm:$0xf]
    %v41 = vld [vmem:[%s0 + $0xa0] sm:$0xf]
    %v42 = vld [vmem:[%s0 + $0xa8] sm:$0xf]
    %v43 = vld [vmem:[%s0 + $0xb0] sm:$0xf]
    %v44 = vld [vmem:[%s0 + $0xb8] sm:$0xf]
    %v45 = vld [vmem:[%s1] sm:$0xff]
    %v46 = vld [vmem:[%s1 + $0x8] sm:$0xff]
    %v47 = vld [vmem:[%s1 + $0x10] sm:$0xff]
    %v48 = vld [vmem:[%s1 + $0x18] sm:$0xff]
    %v49 = vld [vmem:[%s1 + $0x20] sm:$0xff]
    %v50 = vld [vmem:[%s1 + $0x28] sm:$0xff]
    %v51 = vld [vmem:[%s1 + $0x30] sm:$0xff]
    %v52 = vld [vmem:[%s1 + $0x38] sm:$0xff]
    %v53 = vld [vmem:[%s1 + $0x40] sm:$0xff]
    %v54 = vld [vmem:[%s1 + $0x48] sm:$0xff]
    %v55 = vld [vmem:[%s1 + $0x50] sm:$0xff]
    %v56 = vld [vmem:[%s1 + $0x58] sm:$0xff]
    %v57 = vld [vmem:[%s1 + $0x60] sm:$0xff]
    %v58 = vld [vmem:[%s1 + $0x68] sm:$0xff]
    %v59 = vld [vmem:[%s1 + $0x70] sm:$0xff]
    %v60 = vld [vmem:[%s1 + $0x78] sm:$0xff]
    %v61 = vld [vmem:[%s1 + $0x80] sm:$0xff]
    %v62 = vld [vmem:[%s1 + $0x88] sm:$0xff]
    %v63 = vld [vmem:[%s1 + $0x90] sm:$0xff]
    %v64 = vld [vmem:[%s1 + $0x98] sm:$0xff]
    %v65 = vld [vmem:[%s1 + $0xa0] sm:$0xff]
    %v66 = vld [vmem:[%s1 + $0xa8] sm:$0xff]
    %v67 = vld [vmem:[%s1 + $0xb0] sm:$0xff]
    %v68 = vld [vmem:[%s1 + $0xb8] sm:$0xff]
    %v69 = vld [vmem:[%s1 + $0xc0] sm:$0xff]
    %v70 = vld [vmem:[%s1 + $0xc8] sm:$0xff]
    %v71 = vld [vmem:[%s1 + $0xd0] sm:$0xff]
    %v72 = vld [vmem:[%s1 + $0xd8] sm:$0xff]
    %v73 = vld [vmem:[%s1 + $0xe0] sm:$0xff]
    %v74 = vld [vmem:[%s1 + $0xe8] sm:$0xff]
    %v75 = vld [vmem:[%s1 + $0xf0] sm:$0xff]
    %v76 = vld [vmem:[%s1 + $0xf8] sm:$0xff]
    %v77 = vld [vmem:[%s1 + $0x100] sm:$0xff]
    %v78 = vld [vmem:[%s1 + $0x108] sm:$0xff]
    %v79 = vld [vmem:[%s1 + $0x110] sm:$0xff]
    %v80 = vld [vmem:[%s1 + $0x118] sm:$0xff]
    %v81 = vld [vmem:[%s1 + $0x120] sm:$0xff]
    %v82 = vld [vmem:[%s1 + $0x128] sm:$0xff]
    %v83 = vld [vmem:[%s1 + $0x130] sm:$0xff]
    %v84 = vld [vmem:[%s1 + $0x138] sm:$0xff]
    %v85 = vld [vmem:[%s1 + $0x140] sm:$0xff]
    %v86 = vld [vmem:[%s1 + $0x148] sm:$0xff]
    %v87 = vld [vmem:[%s1 + $0x150] sm:$0xff]
    %v88 = vld [vmem:[%s1 + $0x158] sm:$0xff]
    %v89 = vld [vmem:[%s1 + $0x160] sm:$0xff]
    %v90 = vld [vmem:[%s1 + $0x168] sm:$0xff]
    %v91 = vld [vmem:[%s1 + $0x170] sm:$0xff]
    %v92 = vld [vmem:[%s1 + $0x178] sm:$0xff]
    %v93 = vld [vmem:[%s1 + $0x180] sm:$0xff]
    %v94 = vld [vmem:[%s1 + $0x188] sm:$0xff]
    %v95 = vld [vmem:[%s1 + $0x190] sm:$0xff]
    %v96 = vld [vmem:[%s1 + $0x198] sm:$0xff]
    %v97 = vld [vmem:[%s1 + $0x1a0] sm:$0xff]
    %v98 = vld [vmem:[%s1 + $0x1a8] sm:$0xff]
    %v99 = vld [vmem:[%s1 + $0x1b0] sm:$0xff]
    %v100 = vld [vmem:[%s1 + $0x1b8] sm:$0xff]
    %v101 = vld [vmem:[%s1 + $0x1c0] sm:$0xff]
    %v102 = vld [vmem:[%s1 + $0x1c8] sm:$0xff]
    %v103 = vld [vmem:[%s1 + $0x1d0] sm:$0xff]
    %v104 = vld [vmem:[%s1 + $0x1d8] sm:$0xff]
    %v105 = vld [vmem:[%s1 + $0x1e0] sm:$0xff]
    %v106 = vld [vmem:[%s1 + $0x1e8] sm:$0xff]
    %v107 = vld [vmem:[%s1 + $0x1f0] sm:$0xff]
    %v108 = vld [vmem:[%s1 + $0x1f8] sm:$0xff]
    %v109 = vld [vmem:[%s1 + $0x200] sm:$0xff]
    %v110 = vld [vmem:[%s1 + $0x208] sm:$0xff]
    %v111 = vld [vmem:[%s1 + $0x210] sm:$0xff]
    %v112 = vld [vmem:[%s1 + $0x218] sm:$0xff]
    %v113 = vld [vmem:[%s1 + $0x220] sm:$0xff]
    %v114 = vld [vmem:[%s1 + $0x228] sm:$0xff]
    %v115 = vld [vmem:[%s1 + $0x230] sm:$0xff]
    %v116 = vld [vmem:[%s1 + $0x238] sm:$0xff]
    %v117 = vld [vmem:[%s1 + $0x240] sm:$0xff]
    %v118 = vld [vmem:[%s1 + $0x248] sm:$0xff]
    %v119 = vld [vmem:[%s1 + $0x250] sm:$0xff]
    %v120 = vld [vmem:[%s1 + $0x258] sm:$0xff]
    %v121 = vld [vmem:[%s1 + $0x260] sm:$0xff]
    %v122 = vld [vmem:[%s1 + $0x268] sm:$0xff]
    %v123 = vld [vmem:[%s1 + $0x270] sm:$0xff]
    %v124 = vld [vmem:[%s1 + $0x278] sm:$0xff]
    %v125 = vld [vmem:[%s1 + $0x280] sm:$0xff]
    %v126 = vld [vmem:[%s1 + $0x288] sm:$0xff]
    %v127 = vld [vmem:[%s1 + $0x290] sm:$0xff]
    %v128 = vld [vmem:[%s1 + $0x298] sm:$0xff]
    %v129 = vld [vmem:[%s1 + $0x2a0] sm:$0xff]
    %v130 = vld [vmem:[%s1 + $0x2a8] sm:$0xff]
    %v131 = vld [vmem:[%s1 + $0x2b0] sm:$0xff]
    %v132 = vld [vmem:[%s1 + $0x2b8] sm:$0xff]
    %v133 = vld [vmem:[%s1 + $0x2c0] sm:$0xff]
    %v134 = vld [vmem:[%s1 + $0x2c8] sm:$0xff]
    %v135 = vld [vmem:[%s1 + $0x2d0] sm:$0xff]
    %v136 = vld [vmem:[%s1 + $0x2d8] sm:$0xff]
    %v137 = vld [vmem:[%s1 + $0x2e0] sm:$0xff]
    %v138 = vld [vmem:[%s1 + $0x2e8] sm:$0xff]
    %v139 = vld [vmem:[%s1 + $0x2f0] sm:$0xff]
    %v140 = vld [vmem:[%s1 + $0x2f8] sm:$0xff]
    %v165 = vcombine.low %v21, %v22
    %v166 = vcombine.high %v21, %v22
    %v167 = vcombine.low %v23, %v24
    %v168 = vcombine.high %v23, %v24
    %v169 = vcombine.low %v25, %v26
    %v170 = vcombine.high %v25, %v26
    %v171 = vcombine.low %v27, %v28
    %v172 = vcombine.low %v29, %v30
    %v173 = vcombine.low %v31, %v32
    %v174 = vcombine.low %v33, %v34
    %v175 = vcombine.high %v33, %v34
    %v176 = vcombine.low %v35, %v36
    %v177 = vcombine.high %v35, %v36
    %v178 = vcombine.low %v37, %v38
    %v179 = vcombine.high %v37, %v38
    %v180 = vcombine.low %v39, %v40
    %v181 = vcombine.low %v41, %v42
    %v182 = vcombine.low %v43, %v44
    %v183 = vcombine.low %v165, %v166
    %v184 = vcombine.high %v165, %v166
    %v185 = vcombine.low %v167, %v168
    %v186 = vcombine.high %v167, %v168
    %v187 = vcombine.low %v169, %v170
    %v188 = vcombine.high %v169, %v170
    %v189 = vcombine.low %v171, %v174
    %v190 = vcombine.high %v171, %v174
    %v191 = vcombine.low %v172, %v176
    %v192 = vcombine.high %v172, %v176
    %v193 = vcombine.low %v173, %v178
    %v194 = vcombine.high %v173, %v178
    %v195 = vcombine.low %v175, %v180
    %v196 = vcombine.high %v175, %v180
    %v197 = vcombine.low %v177, %v181
    %v198 = vcombine.high %v177, %v181
    %v199 = vcombine.low %v179, %v182
    %v200 = vcombine.high %v179, %v182
    %219 = vmatprep.subr.mxu0 0.0
    %220 = vmatpush1.msra.mxu0 %v60
    %221 = vmatprep.subr.mxu0 0.0
    %222 = vmatpush1.msra.mxu0 %v59
    %223 = vmatprep.subr.mxu0 0.0
    %224 = vmatpush1.msra.mxu0 %v58
    %225 = vmatprep.subr.mxu0 0.0
    %226 = vmatpush1.msra.mxu0 %v57
    %227 = vmatprep.subr.mxu0 0.0
    %228 = vmatpush1.msra.mxu0 %v56
    %229 = vmatprep.subr.mxu0 0.0
    %230 = vmatpush1.msra.mxu0 %v55
    %231 = vmatprep.subr.mxu0 0.0
    %232 = vmatpush1.msra.mxu0 %v54
    %233 = vmatprep.subr.mxu0 0.0
    %234 = vmatpush1.msra.mxu0 %v53
    %235 = vmatprep.subr.mxu0 0.0
    %236 = vmatpush1.msra.mxu0 %v52
    %237 = vmatprep.subr.mxu0 0.0
    %238 = vmatpush1.msra.mxu0 %v51
    %239 = vmatprep.subr.mxu0 0.0
    %240 = vmatpush1.msra.mxu0 %v50
    %241 = vmatprep.subr.mxu0 0.0
    %242 = vmatpush1.msra.mxu0 %v49
    %243 = vmatprep.subr.mxu0 0.0
    %244 = vmatpush1.msra.mxu0 %v48
    %245 = vmatprep.subr.mxu0 0.0
    %246 = vmatpush1.msra.mxu0 %v47
    %247 = vmatprep.subr.mxu0 0.0
    %248 = vmatpush1.msra.mxu0 %v46
    %249 = vmatprep.subr.mxu0 0.0
    %250 = vmatpush1.msra.mxu0 %v45
    %251 = vmatprep.subr.mxu0 0.0
    %252 = vmatpush2.msra.mxu0 %v76
    %253 = vmatprep.subr.mxu0 0.0
    %254 = vmatpush2.msra.mxu0 %v75
    %255 = vmatprep.subr.mxu0 0.0
    %256 = vmatpush2.msra.mxu0 %v74
    %257 = vmatprep.subr.mxu0 0.0
    %258 = vmatpush2.msra.mxu0 %v73
    %259 = vmatprep.subr.mxu0 0.0
    %260 = vmatpush2.msra.mxu0 %v72
    %261 = vmatprep.subr.mxu0 0.0
    %262 = vmatpush2.msra.mxu0 %v71
    %263 = vmatprep.subr.mxu0 0.0
    %264 = vmatpush2.msra.mxu0 %v70
    %265 = vmatprep.subr.mxu0 0.0
    %266 = vmatpush2.msra.mxu0 %v69
    %267 = vmatprep.subr.mxu0 0.0
    %268 = vmatpush2.msra.mxu0 %v68
    %269 = vmatprep.subr.mxu0 0.0
    %270 = vmatpush2.msra.mxu0 %v67
    %271 = vmatprep.subr.mxu0 0.0
    %272 = vmatpush2.msra.mxu0 %v66
    %273 = vmatprep.subr.mxu0 0.0
    %274 = vmatpush2.msra.mxu0 %v65
    %275 = vmatprep.subr.mxu0 0.0
    %276 = vmatpush2.msra.mxu0 %v64
    %277 = vmatprep.subr.mxu0 0.0
    %278 = vmatpush2.msra.mxu0 %v63
    %279 = vmatprep.subr.mxu0 0.0
    %280 = vmatpush2.msra.mxu0 %v62
    %281 = vmatprep.subr.mxu0 0.0
    %282 = vmatpush2.msra.mxu0 %v61
    %283 = vmatprep.mubr.f32.mxu0 %v184
    %284 = vmatmul.mubr.f32.gmra.mxu0 %v183
    %v285 = vpop.f32.mrf.mxu0
    %v286 = vadd.f32 0.0, %v285
    %v287 = vpop.f32.mrf.mxu0
    %288 = vmatprep.mubr.f32.mxu0 %v190
    %289 = vmatmul.mubr.f32.gmra.mxu0 %v189
    %v290 = vpop.f32.mrf.mxu0
    %v291 = vadd.f32 0.0, %v290
    %v292 = vpop.f32.mrf.mxu0
    %293 = vmatprep.mubr.f32.mxu0 %v196
    %294 = vmatmul.mubr.f32.gmra.mxu0 %v195
    %v295 = vpop.f32.mrf.mxu0
    %v296 = vadd.f32 0.0, %v295
    %v297 = vpop.f32.mrf.mxu0
    %298 = vdwg.mxu0
    %299 = vmatprep.subr.mxu0 0.0
    %300 = vmatpush1.msra.mxu0 %v92
    %301 = vmatprep.subr.mxu0 0.0
    %302 = vmatpush1.msra.mxu0 %v91
    %303 = vmatprep.subr.mxu0 0.0
    %304 = vmatpush1.msra.mxu0 %v90
    %305 = vmatprep.subr.mxu0 0.0
    %306 = vmatpush1.msra.mxu0 %v89
    %307 = vmatprep.subr.mxu0 0.0
    %308 = vmatpush1.msra.mxu0 %v88
    %309 = vmatprep.subr.mxu0 0.0
    %310 = vmatpush1.msra.mxu0 %v87
    %311 = vmatprep.subr.mxu0 0.0
    %312 = vmatpush1.msra.mxu0 %v86
    %313 = vmatprep.subr.mxu0 0.0
    %314 = vmatpush1.msra.mxu0 %v85
    %315 = vmatprep.subr.mxu0 0.0
    %316 = vmatpush1.msra.mxu0 %v84
    %317 = vmatprep.subr.mxu0 0.0
    %318 = vmatpush1.msra.mxu0 %v83
    %319 = vmatprep.subr.mxu0 0.0
    %320 = vmatpush1.msra.mxu0 %v82
    %321 = vmatprep.subr.mxu0 0.0
    %322 = vmatpush1.msra.mxu0 %v81
    %323 = vmatprep.subr.mxu0 0.0
    %324 = vmatpush1.msra.mxu0 %v80
    %325 = vmatprep.subr.mxu0 0.0
    %326 = vmatpush1.msra.mxu0 %v79
    %327 = vmatprep.subr.mxu0 0.0
    %328 = vmatpush1.msra.mxu0 %v78
    %329 = vmatprep.subr.mxu0 0.0
    %330 = vmatpush1.msra.mxu0 %v77
    %331 = vmatprep.subr.mxu0 0.0
    %332 = vmatpush2.msra.mxu0 %v108
    %333 = vmatprep.subr.mxu0 0.0
    %334 = vmatpush2.msra.mxu0 %v107
    %335 = vmatprep.subr.mxu0 0.0
    %336 = vmatpush2.msra.mxu0 %v106
    %337 = vmatprep.subr.mxu0 0.0
    %338 = vmatpush2.msra.mxu0 %v105
    %339 = vmatprep.subr.mxu0 0.0
    %340 = vmatpush2.msra.mxu0 %v104
    %341 = vmatprep.subr.mxu0 0.0
    %342 = vmatpush2.msra.mxu0 %v103
    %343 = vmatprep.subr.mxu0 0.0
    %344 = vmatpush2.msra.mxu0 %v102
    %345 = vmatprep.subr.mxu0 0.0
    %346 = vmatpush2.msra.mxu0 %v101
    %347 = vmatprep.subr.mxu0 0.0
    %348 = vmatpush2.msra.mxu0 %v100
    %349 = vmatprep.subr.mxu0 0.0
    %350 = vmatpush2.msra.mxu0 %v99
    %351 = vmatprep.subr.mxu0 0.0
    %352 = vmatpush2.msra.mxu0 %v98
    %353 = vmatprep.subr.mxu0 0.0
    %354 = vmatpush2.msra.mxu0 %v97
    %355 = vmatprep.subr.mxu0 0.0
    %356 = vmatpush2.msra.mxu0 %v96
    %357 = vmatprep.subr.mxu0 0.0
    %358 = vmatpush2.msra.mxu0 %v95
    %359 = vmatprep.subr.mxu0 0.0
    %360 = vmatpush2.msra.mxu0 %v94
    %361 = vmatprep.subr.mxu0 0.0
    %362 = vmatpush2.msra.mxu0 %v93
    %363 = vmatprep.mubr.f32.mxu0 %v186
    %364 = vmatmul.mubr.f32.gmra.mxu0 %v185
    %v365 = vpop.f32.mrf.mxu0
    %v366 = vadd.f32 %v286, %v365
    %v367 = vpop.f32.mrf.mxu0
    %368 = vmatprep.mubr.f32.mxu0 %v192
    %369 = vmatmul.mubr.f32.gmra.mxu0 %v191
    %v370 = vpop.f32.mrf.mxu0
    %v371 = vadd.f32 %v291, %v370
    %v372 = vpop.f32.mrf.mxu0
    %373 = vmatprep.mubr.f32.mxu0 %v198
    %374 = vmatmul.mubr.f32.gmra.mxu0 %v197
    %v375 = vpop.f32.mrf.mxu0
    %v376 = vadd.f32 %v296, %v375
    %v377 = vpop.f32.mrf.mxu0
    %378 = vdwg.mxu0
    %379 = vmatprep.subr.mxu0 0.0
    %380 = vmatpush1.msra.mxu0 %v124
    %381 = vmatprep.subr.mxu0 0.0
    %382 = vmatpush1.msra.mxu0 %v123
    %383 = vmatprep.subr.mxu0 0.0
    %384 = vmatpush1.msra.mxu0 %v122
    %385 = vmatprep.subr.mxu0 0.0
    %386 = vmatpush1.msra.mxu0 %v121
    %387 = vmatprep.subr.mxu0 0.0
    %388 = vmatpush1.msra.mxu0 %v120
    %389 = vmatprep.subr.mxu0 0.0
    %390 = vmatpush1.msra.mxu0 %v119
    %391 = vmatprep.subr.mxu0 0.0
    %392 = vmatpush1.msra.mxu0 %v118
    %393 = vmatprep.subr.mxu0 0.0
    %394 = vmatpush1.msra.mxu0 %v117
    %395 = vmatprep.subr.mxu0 0.0
    %396 = vmatpush1.msra.mxu0 %v116
    %397 = vmatprep.subr.mxu0 0.0
    %398 = vmatpush1.msra.mxu0 %v115
    %399 = vmatprep.subr.mxu0 0.0
    %400 = vmatpush1.msra.mxu0 %v114
    %401 = vmatprep.subr.mxu0 0.0
    %402 = vmatpush1.msra.mxu0 %v113
    %403 = vmatprep.subr.mxu0 0.0
    %404 = vmatpush1.msra.mxu0 %v112
    %405 = vmatprep.subr.mxu0 0.0
    %406 = vmatpush1.msra.mxu0 %v111
    %407 = vmatprep.subr.mxu0 0.0
    %408 = vmatpush1.msra.mxu0 %v110
    %409 = vmatprep.subr.mxu0 0.0
    %410 = vmatpush1.msra.mxu0 %v109
    %411 = vmatprep.subr.mxu0 0.0
    %412 = vmatpush2.msra.mxu0 %v140
    %413 = vmatprep.subr.mxu0 0.0
    %414 = vmatpush2.msra.mxu0 %v139
    %415 = vmatprep.subr.mxu0 0.0
    %416 = vmatpush2.msra.mxu0 %v138
    %417 = vmatprep.subr.mxu0 0.0
    %418 = vmatpush2.msra.mxu0 %v137
    %419 = vmatprep.subr.mxu0 0.0
    %420 = vmatpush2.msra.mxu0 %v136
    %421 = vmatprep.subr.mxu0 0.0
    %422 = vmatpush2.msra.mxu0 %v135
    %423 = vmatprep.subr.mxu0 0.0
    %424 = vmatpush2.msra.mxu0 %v134
    %425 = vmatprep.subr.mxu0 0.0
    %426 = vmatpush2.msra.mxu0 %v133
    %427 = vmatprep.subr.mxu0 0.0
    %428 = vmatpush2.msra.mxu0 %v132
    %429 = vmatprep.subr.mxu0 0.0
    %430 = vmatpush2.msra.mxu0 %v131
    %431 = vmatprep.subr.mxu0 0.0
    %432 = vmatpush2.msra.mxu0 %v130
    %433 = vmatprep.subr.mxu0 0.0
    %434 = vmatpush2.msra.mxu0 %v129
    %435 = vmatprep.subr.mxu0 0.0
    %436 = vmatpush2.msra.mxu0 %v128
    %437 = vmatprep.subr.mxu0 0.0
    %438 = vmatpush2.msra.mxu0 %v127
    %439 = vmatprep.subr.mxu0 0.0
    %440 = vmatpush2.msra.mxu0 %v126
    %441 = vmatprep.subr.mxu0 0.0
    %442 = vmatpush2.msra.mxu0 %v125
    %443 = vmatprep.mubr.f32.mxu0 %v188
    %444 = vmatmul.mubr.f32.gmra.mxu0 %v187
    %v445 = vpop.f32.mrf.mxu0
    %v446 = vadd.f32 %v366, %v445
    %v447 = vpop.f32.mrf.mxu0
    %448 = vmatprep.mubr.f32.mxu0 %v194
    %449 = vmatmul.mubr.f32.gmra.mxu0 %v193
    %v450 = vpop.f32.mrf.mxu0
    %v451 = vadd.f32 %v371, %v450
    %v452 = vpop.f32.mrf.mxu0
    %453 = vmatprep.mubr.f32.mxu0 %v200
    %454 = vmatmul.mubr.f32.gmra.mxu0 %v199
    %v455 = vpop.f32.mrf.mxu0
    %v456 = vadd.f32 %v376, %v455
    %v457 = vpop.f32.mrf.mxu0
    %458 = vdwg.mxu0
    %v462 = vcombine.high %v446, %v446
    %v463 = vcombine.high %v451, %v451
    %v464 = vcombine.high %v456, %v456
    %vm468 = vcmask 1042432
    %vm469 = vcmask 1046532
    %vm470 = vmor %vm468, %vm469
    %v471 = vrot.slane %v446, 5
    %v472 = vrot.slane %v471, 4
    %v473 = vrot.slane %v462, 5
    %v474 = vsel %vm470, %v472, %v473
    %v475 = vrot.slane %v473, 4
    %v476 = vrot.slane %v451, 5
    %v477 = vsel %vm470, %v475, %v476
    %v478 = vrot.slane %v476, 4
    %v479 = vrot.slane %v463, 5
    %v480 = vrot.slane %v479, 4
    %v481 = vrot.slane %v456, 5
    %v482 = vsel %vm470, %v480, %v481
    %v483 = vrot.slane %v481, 4
    %v484 = vrot.slane %v464, 5
    %v485 = vsel %vm470, %v483, %v484
    %v486 = vrot.slane %v484, 4
    %487 = vrot.lane.b32.xlu0 %v474, 119
    %v488 = vpop.permute.xlu0 %487
    %489 = vrot.lane.b32.xlu0 %v477, 119
    %v490 = vpop.permute.xlu0 %489
    %491 = vrot.lane.b32.xlu0 %v478, 119
    %v492 = vpop.permute.xlu0 %491
    %493 = vrot.lane.b32.xlu0 %v482, 119
    %v494 = vpop.permute.xlu0 %493
    %495 = vrot.lane.b32.xlu0 %v485, 119
    %v496 = vpop.permute.xlu0 %495
    %497 = vrot.lane.b32.xlu0 %v486, 119
    %v498 = vpop.permute.xlu0 %497
    %v505 = vadd.f32 %v446, %v488
    %v506 = vadd.f32 %v462, %v490
    %v507 = vadd.f32 %v451, %v492
    %v508 = vadd.f32 %v463, %v494
    %v509 = vadd.f32 %v456, %v496
    %v510 = vadd.f32 %v464, %v498
    %v515 = vcombine.low %v505, %v506
    %v516 = vcombine.low %v508, %v509
    %vm519 = vcmask 72704
    %v520 = vsel %vm519, %v515, -inf
    %vm521 = vcmask 67584
    %v522 = vsel %vm521, %v507, -inf
    %v523 = vmax.f32 %v520, %v522
    %v524 = vrot.slane %v523, 4
    %v525 = vmax.f32 %v523, %v524
    %v526 = vrot.slane %v525, 2
    %v527 = vmax.f32 %v525, %v526
    %v528 = vrot.slane %v527, 1
    %v529 = vmax.f32 %v527, %v528
    %v530 = vsel %vm519, %v516, -inf
    %v531 = vsel %vm521, %v510, -inf
    %v532 = vmax.f32 %v530, %v531
    %v533 = vrot.slane %v532, 4
    %v534 = vmax.f32 %v532, %v533
    %v535 = vrot.slane %v534, 2
    %v536 = vmax.f32 %v534, %v535
    %v537 = vrot.slane %v536, 1
    %v538 = vmax.f32 %v536, %v537
    %v539 = vld [vmem:[%s2] sm:$0x1]
    %v541 = vlaneseq
    %v542 = vshrl.u32 %v541, 7
    %v543 = vsub.s32 0, %v542
    %v544 = vrot.slane %v539, %v543
    %v546 = vadd.f32 %v529, %v544
    %v547 = vadd.f32 %v538, %v544
    %v548 = vmax.f32 %v546, 0.0
    %v549 = vmax.f32 %v547, 0.0
    %v550 = vld [vmem:[%s3] sm:$0xff]
    %v551 = vld [vmem:[%s3 + $0x8] sm:$0x1]
    %v552 = vld [vmem:[%s4] sm:$0x1]
    %v554 = vlaneseq
    %v555 = vshrl.u32 %v554, 7
    %v556 = vsub.s32 0, %v555
    %v557 = vrot.slane %v552, %v556
    %v561 = vrot.slane %v549, 7
    %vm562 = vcmask 1041409
    %v563 = vsel %vm562, %v561, %v548
    %v564 = vsel %vm519, %v563, 0
    %vm566 = vcmask 1040384
    %v568 = vsel %vm566, %v551, 0
    %570 = vmatprep.subr.mxu0 0.0
    %571 = vmatpush1.msra.mxu0 0.0
    %572 = vmatprep.subr.mxu0 0.0
    %573 = vmatpush1.msra.mxu0 0.0
    %574 = vmatprep.subr.mxu0 0.0
    %575 = vmatpush1.msra.mxu0 0.0
    %576 = vmatprep.subr.mxu0 0.0
    %577 = vmatpush1.msra.mxu0 0.0
    %578 = vmatprep.subr.mxu0 0.0
    %579 = vmatpush1.msra.mxu0 0.0
    %580 = vmatprep.subr.mxu0 0.0
    %581 = vmatpush1.msra.mxu0 0.0
    %582 = vmatprep.subr.mxu0 0.0
    %583 = vmatpush1.msra.mxu0 0.0
    %584 = vmatprep.subr.mxu0 0.0
    %585 = vmatpush1.msra.mxu0 0.0
    %586 = vmatprep.subr.mxu0 0.0
    %587 = vmatpush1.msra.mxu0 0.0
    %588 = vmatprep.subr.mxu0 0.0
    %589 = vmatpush1.msra.mxu0 0.0
    %590 = vmatprep.subr.mxu0 0.0
    %591 = vmatpush1.msra.mxu0 0.0
    %592 = vmatprep.subr.mxu0 0.0
    %593 = vmatpush1.msra.mxu0 0.0
    %594 = vmatprep.subr.mxu0 0.0
    %595 = vmatpush1.msra.mxu0 0.0
    %596 = vmatprep.subr.mxu0 0.0
    %597 = vmatpush1.msra.mxu0 0.0
    %598 = vmatprep.subr.mxu0 0.0
    %599 = vmatpush1.msra.mxu0 %v568
    %600 = vmatprep.subr.mxu0 0.0
    %601 = vmatpush1.msra.mxu0 %v550
    %602 = vmatprep.subr.mxu0 0.0
    %603 = vmatpush2.msra.mxu0 0.0
    %604 = vmatprep.subr.mxu0 0.0
    %605 = vmatpush2.msra.mxu0 0.0
    %606 = vmatprep.subr.mxu0 0.0
    %607 = vmatpush2.msra.mxu0 0.0
    %608 = vmatprep.subr.mxu0 0.0
    %609 = vmatpush2.msra.mxu0 0.0
    %610 = vmatprep.subr.mxu0 0.0
    %611 = vmatpush2.msra.mxu0 0.0
    %612 = vmatprep.subr.mxu0 0.0
    %613 = vmatpush2.msra.mxu0 0.0
    %614 = vmatprep.subr.mxu0 0.0
    %615 = vmatpush2.msra.mxu0 0.0
    %616 = vmatprep.subr.mxu0 0.0
    %617 = vmatpush2.msra.mxu0 0.0
    %618 = vmatprep.subr.mxu0 0.0
    %619 = vmatpush2.msra.mxu0 0.0
    %620 = vmatprep.subr.mxu0 0.0
    %621 = vmatpush2.msra.mxu0 0.0
    %622 = vmatprep.subr.mxu0 0.0
    %623 = vmatpush2.msra.mxu0 0.0
    %624 = vmatprep.subr.mxu0 0.0
    %625 = vmatpush2.msra.mxu0 0.0
    %626 = vmatprep.subr.mxu0 0.0
    %627 = vmatpush2.msra.mxu0 0.0
    %628 = vmatprep.subr.mxu0 0.0
    %629 = vmatpush2.msra.mxu0 0.0
    %630 = vmatprep.subr.mxu0 0.0
    %631 = vmatpush2.msra.mxu0 0.0
    %632 = vmatprep.subr.mxu0 0.0
    %633 = vmatpush2.msra.mxu0 0.0
    %634 = vmatprep.mubr.f32.mxu0 0.0
    %635 = vmatmul.mubr.f32.gmra.mxu0 %v564
    %v636 = vpop.f32.mrf.mxu0
    %v637 = vadd.f32 %v557, %v636
    %v638 = vpop.f32.mrf.mxu0
    %639 = vdwg.mxu0
    %vm640 = vcmask 1041408
    %v641 = vsel %vm640, %v637, -inf
    %642 = vmax.xlane.f32.xlu0 %v641
    %v643 = vpop.xlane.xlu0 %642
    %v644 = vsub.f32 %v637, %v643
    %v645 = vmul.f32 %v644, 1.442695
    %v646 = vpow.pop %v645
    %v647 = vsel %vm640, %v646, 0.0
    %648 = vadd.xlane.f32.xlu0 %v647
    %v649 = vpop.xlane.xlu0 %648
    %v650 = vrcp.pop %v649
    %v651 = vmul.f32 %v646, %v650
    %652 = vst [vmem:[#allocation2] sm:$0x3] %v651
    // Predicated region
    $region22: #{tpu_custom_call.1} parent=1 // pred_check
      _
    $region23: #{tpu_custom_call.1} parent=1 // pred_check_branch
      %654 = sbr.rel (0) target = $region25
    $region24: #{tpu_custom_call.1} parent=1 // pred_region
      %s656 = ssub.s32 32, 32
      %657 = vsyncadd [#allocation3], %s656
      %s659 = sshll.u32 [#allocation2], 4
      %s660 = int_to_ptr.vmem [resolvable:$true] %s659
      %662 = dma.vmem_to_hbm [thread:$0]  %s660, 32, %s5, [#allocation3]
    $region25: #{tpu_custom_call.1} parent=1 // pred_fallthru
      _
    // Predicated region
    $region26: #{tpu_custom_call.1} parent=1 // pred_check
      _
    $region27: #{tpu_custom_call.1} parent=1 // pred_check_branch
      %664 = sbr.rel (0) target = $region29
    $region28: #{tpu_custom_call.1} parent=1 // pred_region
      %665 = dma.done [#allocation3], 32
    $region29: #{tpu_custom_call.1} parent=1 // pred_fallthru
      _
    %666 = vsyncpa [#allocation3], 1

</llo_original>
